<compile_context>
chip_gen: v7x
topology: tpu7x:2x2x1
jax: 0.10.0
libtpu: 0.0.40
codegen_flags: <defaults>
</compile_context>

<pallas_src>
import functools

import jax
import jax.numpy as jnp
from jax.experimental import pallas as pl
from jax.experimental.pallas import tpu as pltpu

LANE = 128      # vreg lane width: feature dims padded to multiples of this
SUBLANE = 8     # sublane count: batch tile must be a multiple of this
MIB = 1024 * 1024


def _round_up(x, m):
    return ((x + m - 1) // m) * m


def _lrelu(v, slope=0.2):
    # f32 elementwise (VPU); safe on v5e (no bf16 VPU path).
    return jnp.where(v > 0, v, slope * v)


def _tpu_kind():
    try:
        return jax.devices()[0].device_kind.lower()
    except Exception:
        return ""


def _vmem_capacity_bytes():
    """Physical VMEM per TensorCore for the current generation."""
    try:
        cap = int(pltpu.get_tpu_info().vmem_capacity_bytes)
        if cap > 0:
            return cap
    except Exception:
        pass
    # Fallback: v7x has 64 MiB / TC, v5e & v6e have 128 MiB.
    return 64 * MIB if "7" in _tpu_kind() else 128 * MIB


def _num_tensorcores():
    # v7x has 2 TensorCores per chip; v5e / v6e have 1.
    return 2 if "7" in _tpu_kind() else 1


# ---------------------------------------------------------------------------
# Kernel: one (TILE_B, .) batch tile through all 5 layers; weights resident.
# ---------------------------------------------------------------------------
def mlp_kernel(res_ref, noise_ref,
               w1_ref, b1_ref, w2_ref, b2_ref, w3_ref, b3_ref,
               w4_ref, b4_ref, w5_ref, b5_ref, o_ref):
    # Activations arrive in f32; cast to bf16 on the VPU (saves the wrapper
    # cast + an extra HBM activation stream).  Layer 1 is a single
    # K=(Rp+Np) dot against the pre-stacked W1 (fills the 256-deep MXU on
    # v6e/v7x); the concat lives only in VMEM.
    x = jnp.concatenate([res_ref[...].astype(jnp.bfloat16),
                         noise_ref[...].astype(jnp.bfloat16)], axis=1)
    h = jnp.dot(x, w1_ref[...], preferred_element_type=jnp.float32) + b1_ref[...]
    h = _lrelu(h).astype(jnp.bfloat16)

    h = _lrelu(jnp.dot(h, w2_ref[...], preferred_element_type=jnp.float32)
               + b2_ref[...]).astype(jnp.bfloat16)
    h = _lrelu(jnp.dot(h, w3_ref[...], preferred_element_type=jnp.float32)
               + b3_ref[...]).astype(jnp.bfloat16)
    h = _lrelu(jnp.dot(h, w4_ref[...], preferred_element_type=jnp.float32)
               + b4_ref[...]).astype(jnp.bfloat16)

    h5 = (jnp.dot(h, w5_ref[...], preferred_element_type=jnp.float32)
          + b5_ref[...])
    o_ref[...] = jnp.maximum(h5, 0.0).astype(o_ref.dtype)   # final ReLU, bf16 out


# ---------------------------------------------------------------------------
# One-time weight preparation (hoisted out of the per-call forward).
# ---------------------------------------------------------------------------
def prepare_params(params, res_size):
    """Pad + bf16-cast the weights ONCE per parameter set.

    W1 is stacked with its (res, noise) halves placed at their lane-padded
    offsets so the kernel can run a single K=(Rp+Np) layer-1 matmul against
    the in-VMEM concat of the activation tiles.  Biases stay f32 (they are
    added in the f32 accumulation domain).
    """
    in1 = params["w1"].shape[0]
    r_nz = in1 - res_size
    h1, h2, h3, h4 = (params[f"w{i}"].shape[1] for i in range(1, 5))
    att = params["w5"].shape[1]

    Rp, Np = _round_up(res_size, LANE), _round_up(r_nz, LANE)
    H1p, H2p, H3p, H4p, Ap = (_round_up(d, LANE) for d in (h1, h2, h3, h4, att))

    w1 = params["w1"].astype(jnp.bfloat16)
    w1s = jnp.zeros((Rp + Np, H1p), jnp.bfloat16)
    w1s = w1s.at[:res_size, :h1].set(w1[:res_size])
    w1s = w1s.at[Rp:Rp + r_nz, :h1].set(w1[res_size:])

    def pad_w(w, rows, cols):
        r, c = w.shape
        return jnp.pad(w.astype(jnp.bfloat16), ((0, rows - r), (0, cols - c)))

    def pad_b(b, cols):
        b = b.reshape(1, -1).astype(jnp.float32)
        return jnp.pad(b, ((0, 0), (0, cols - b.shape[1])))

    weights = (w1s, pad_b(params["b1"], H1p),
               pad_w(params["w2"], H1p, H2p), pad_b(params["b2"], H2p),
               pad_w(params["w3"], H2p, H3p), pad_b(params["b3"], H3p),
               pad_w(params["w4"], H3p, H4p), pad_b(params["b4"], H4p),
               pad_w(params["w5"], H4p, Ap), pad_b(params["b5"], Ap))
    dims = (res_size, r_nz, att, Rp, Np, H1p, H2p, H3p, H4p, Ap)
    return weights, dims


# ---------------------------------------------------------------------------
# Forward pass.
# ---------------------------------------------------------------------------
@functools.partial(jax.jit, static_argnames=("dims", "tile_b"))
def _forward(res, r_noise, weights, dims, tile_b):
    res_size, r_nz, att, Rp, Np, H1p, H2p, H3p, H4p, Ap = dims
    B = res.shape[0]

    weight_bytes = sum(int(w.size) * w.dtype.itemsize for w in weights)
    hmax = max(Rp + Np, H1p, H2p, H3p, H4p, Ap)

    def vmem_needed(tb_):
        # single-buffered resident weights + double-buffered f32 input tiles
        # + double-buffered bf16 output tile + in-kernel concat buffer
        # + f32 dot result / bf16 activation copy temporaries.
        return (weight_bytes
                + 2 * tb_ * (Rp + Np) * 4
                + 2 * tb_ * Ap * 2
                + tb_ * (Rp + Np) * 2
                + tb_ * hmax * 6)

    cap = _vmem_capacity_bytes()
    budget = cap - cap // 8        # ~112 MiB on v5e/v6e, ~56 MiB per-TC on v7x

    # Batch tile: default 256 (MXU-sized M); sweep up to 512 on 128 MiB chips.
    tb = max(SUBLANE, min(_round_up(tile_b, SUBLANE), _round_up(B, SUBLANE)))

    # v7x megacore: make sure the "parallel" batch axis has >= 2 grid steps so
    # the second TensorCore is not idle.
    if _num_tensorcores() > 1:
        while B <= tb and tb > SUBLANE:
            tb = max(SUBLANE, _round_up(tb // 2, SUBLANE))

    # Per-TC VMEM feasibility (each core holds its own copy of the weights).
    while vmem_needed(tb) > budget and tb > SUBLANE:
        tb = max(SUBLANE, _round_up(tb // 2, SUBLANE))
    if vmem_needed(tb) > budget:
        # TODO(synk): stream the widest layer's weight with pltpu.emit_pipeline
        # instead of keeping all weights VMEM-resident.
        raise ValueError(
            f"Resident MLP weights ({weight_bytes / MIB:.1f} MiB) exceed the "
            f"per-core VMEM budget ({budget / MIB:.1f} MiB) on this TPU.")

    Bp = _round_up(B, tb)

    # Pad activations only if needed; keep them f32 (cast happens in-kernel).
    if Bp != B or Rp != res_size:
        resp = jnp.pad(res, ((0, Bp - B), (0, Rp - res_size)))
    else:
        resp = res
    if Bp != B or Np != r_nz:
        noisep = jnp.pad(r_noise, ((0, Bp - B), (0, Np - r_nz)))
    else:
        noisep = r_noise

    batch_map = lambda i: (i, 0)     # tile over batch
    const_map = lambda i: (0, 0)     # weights resident across all grid steps

    in_specs = (
        [pl.BlockSpec((tb, Rp), batch_map),
         pl.BlockSpec((tb, Np), batch_map)]
        + [pl.BlockSpec(w.shape, const_map, pipeline_mode=pl.Buffered(1))
           for w in weights])
    out_spec = pl.BlockSpec((tb, Ap), batch_map)

    vmem_limit = int(min(budget, max(vmem_needed(tb) + 4 * MIB, 32 * MIB)))

    flops = 2 * Bp * ((Rp + Np) * H1p + H1p * H2p + H2p * H3p
                      + H3p * H4p + H4p * Ap)
    bytes_accessed = Bp * (Rp + Np) * 4 + weight_bytes + Bp * Ap * 2

    out = pl.pallas_call(
        mlp_kernel,
        out_shape=jax.ShapeDtypeStruct((Bp, Ap), jnp.bfloat16),
        grid=(Bp // tb,),
        in_specs=in_specs,
        out_specs=out_spec,
        compiler_params=pltpu.CompilerParams(
            dimension_semantics=("parallel",),
            vmem_limit_bytes=vmem_limit),
        cost_estimate=pl.CostEstimate(
            flops=flops, transcendentals=0, bytes_accessed=bytes_accessed),
    )(resp, noisep, *weights)

    return out[:B, :att]


def mlp_4hl_reverse_g(res, r_noise, prepared, *, tile_b=256):
    """Forward pass.  `prepared` comes from prepare_params (called once)."""
    weights, dims = prepared
    return _forward(res, r_noise, weights, dims, tile_b)


# ---------------------------------------------------------------------------
# Parameter init & pure-JAX reference (mirrors the PyTorch module).
# ---------------------------------------------------------------------------
def init_params(key, res_size, r_nz, nrgh1, nrgh2, nrgh3, nrgh4, att_size):
    """weights_init: Linear.weight ~ N(0, 0.02), bias = 0.

    Weights are stored as (in_features, out_features) (transpose of PyTorch's
    (out, in)) so the forward computes x @ W + b.
    """
    dims = [(res_size + r_nz, nrgh1), (nrgh1, nrgh2), (nrgh2, nrgh3),
            (nrgh3, nrgh4), (nrgh4, att_size)]
    params = {}
    keys = jax.random.split(key, len(dims))
    for i, ((d_in, d_out), k) in enumerate(zip(dims, keys), start=1):
        params[f"w{i}"] = 0.02 * jax.random.normal(k, (d_in, d_out),
                                                   dtype=jnp.float32)
        params[f"b{i}"] = jnp.zeros((1, d_out), dtype=jnp.float32)
    return params


def reference_forward(res, r_noise, params):
    x = jnp.concatenate([res, r_noise], axis=1)
    h = x
    for i in range(1, 5):
        h = _lrelu(h @ params[f"w{i}"] + params[f"b{i}"])
    h = h @ params["w5"] + params["b5"]
    return jnp.maximum(h, 0.0)


if __name__ == "__main__":
    # small, forward-consistent sizes
    B, res_size, r_nz = 8, 16, 16
    nrgh1, nrgh2, nrgh3, nrgh4, att_size = 32, 32, 32, 32, 16

    key = jax.random.PRNGKey(0)
    k_res, k_noise, k_params = jax.random.split(key, 3)

    res = jax.random.normal(k_res, (B, res_size), dtype=jnp.float32)
    r_noise = jax.random.normal(k_noise, (B, r_nz), dtype=jnp.float32)
    params = init_params(k_params, res_size, r_nz,
                         nrgh1, nrgh2, nrgh3, nrgh4, att_size)

    prepared = prepare_params(params, res_size)          # once per param set
    out = mlp_4hl_reverse_g(res, r_noise, prepared)
    out = jax.block_until_ready(out)

    ref = reference_forward(res, r_noise, params)
    assert out.shape == (B, att_size)

    # bf16 matmul inputs + bf16 output with f32 accumulation: compare relative
    # to the output scale (5 chained 0.02-std layers make absolute values tiny).
    out_f32 = out.astype(jnp.float32)
    err = float(jnp.max(jnp.abs(out_f32 - ref)))
    scale = float(jnp.max(jnp.abs(ref))) + 1e-12
    assert err <= 5e-2 * scale + 1e-7, f"mismatch: err={err} scale={scale}"

    print("KERNEL_OK")
</pallas_src>

<mosaic_0001>
module attributes {stable_mosaic.version = 11 : i64} {
  func.func @mlp_kernel(%arg0: i32, %arg1: memref<8x128xf32, #tpu.memory_space<vmem>>, %arg2: memref<8x128xf32, #tpu.memory_space<vmem>>, %arg3: memref<256x128xbf16, #tpu.memory_space<vmem>>, %arg4: memref<1x128xf32, #tpu.memory_space<vmem>>, %arg5: memref<128x128xbf16, #tpu.memory_space<vmem>>, %arg6: memref<1x128xf32, #tpu.memory_space<vmem>>, %arg7: memref<128x128xbf16, #tpu.memory_space<vmem>>, %arg8: memref<1x128xf32, #tpu.memory_space<vmem>>, %arg9: memref<128x128xbf16, #tpu.memory_space<vmem>>, %arg10: memref<1x128xf32, #tpu.memory_space<vmem>>, %arg11: memref<128x128xbf16, #tpu.memory_space<vmem>>, %arg12: memref<1x128xf32, #tpu.memory_space<vmem>>, %arg13: memref<8x128xbf16, #tpu.memory_space<vmem>>) attributes {dimension_semantics = [#tpu.dimension_semantics<parallel>], iteration_bounds = array<i64: 1>, scalar_prefetch = 0 : i64, scratch_operands = 0 : i64, tpu.core_type = #tpu.core_type<tc>, window_params = [{transform_indices = @transform_0, window_bounds = array<i64: 8, 128>}, {transform_indices = @transform_1, window_bounds = array<i64: 8, 128>}, {pipeline_mode = #tpu.pipeline_mode<synchronous>, transform_indices = @transform_2, window_bounds = array<i64: 256, 128>}, {pipeline_mode = #tpu.pipeline_mode<synchronous>, transform_indices = @transform_3, window_bounds = array<i64: 1, 128>}, {pipeline_mode = #tpu.pipeline_mode<synchronous>, transform_indices = @transform_4, window_bounds = array<i64: 128, 128>}, {pipeline_mode = #tpu.pipeline_mode<synchronous>, transform_indices = @transform_5, window_bounds = array<i64: 1, 128>}, {pipeline_mode = #tpu.pipeline_mode<synchronous>, transform_indices = @transform_6, window_bounds = array<i64: 128, 128>}, {pipeline_mode = #tpu.pipeline_mode<synchronous>, transform_indices = @transform_7, window_bounds = array<i64: 1, 128>}, {pipeline_mode = #tpu.pipeline_mode<synchronous>, transform_indices = @transform_8, window_bounds = array<i64: 128, 128>}, {pipeline_mode = #tpu.pipeline_mode<synchronous>, transform_indices = @transform_9, window_bounds = array<i64: 1, 128>}, {pipeline_mode = #tpu.pipeline_mode<synchronous>, transform_indices = @transform_10, window_bounds = array<i64: 128, 128>}, {pipeline_mode = #tpu.pipeline_mode<synchronous>, transform_indices = @transform_11, window_bounds = array<i64: 1, 128>}, {transform_indices = @transform_12, window_bounds = array<i64: 8, 128>}]} {
    %c0 = arith.constant 0 : index
    %c0_0 = arith.constant 0 : index
    %0 = vector.load %arg1[%c0, %c0_0] : memref<8x128xf32, #tpu.memory_space<vmem>>, vector<8x128xf32>
    %1 = arith.truncf %0 : vector<8x128xf32> to vector<8x128xbf16>
    %c0_1 = arith.constant 0 : index
    %c0_2 = arith.constant 0 : index
    %2 = vector.load %arg2[%c0_1, %c0_2] : memref<8x128xf32, #tpu.memory_space<vmem>>, vector<8x128xf32>
    %3 = arith.truncf %2 : vector<8x128xf32> to vector<8x128xbf16>
    %4 = tpu.concatenate %1, %3 in 1 : vector<8x128xbf16>, vector<8x128xbf16> -> vector<8x256xbf16>
    %c0_3 = arith.constant 0 : index
    %c0_4 = arith.constant 0 : index
    %5 = vector.load %arg3[%c0_3, %c0_4] : memref<256x128xbf16, #tpu.memory_space<vmem>>, vector<256x128xbf16>
    %cst = arith.constant dense<0.000000e+00> : vector<8x128xf32>
    %6 = tpu.matmul %4, %5, %cst {dimension_numbers = #tpu.dot_dimension_numbers<[1], [0], [0], [1], [0, 0, 1, 1], [], []>} : vector<8x256xbf16>, vector<256x128xbf16>, vector<8x128xf32> -> vector<8x128xf32>
    %c0_5 = arith.constant 0 : index
    %c0_6 = arith.constant 0 : index
    %7 = vector.load %arg4[%c0_5, %c0_6] : memref<1x128xf32, #tpu.memory_space<vmem>>, vector<1x128xf32>
    %8 = vector.broadcast %7 : vector<1x128xf32> to vector<8x128xf32>
    %9 = arith.addf %6, %8 : vector<8x128xf32>
    %cst_7 = arith.constant 0.000000e+00 : f32
    %10 = vector.broadcast %cst_7 : f32 to vector<8x128xf32>
    %11 = arith.cmpf ogt, %9, %10 : vector<8x128xf32>
    %cst_8 = arith.constant 2.000000e-01 : f32
    %12 = vector.broadcast %cst_8 : f32 to vector<8x128xf32>
    %13 = arith.mulf %12, %9 : vector<8x128xf32>
    %14 = arith.select %11, %9, %13 : vector<8x128xi1>, vector<8x128xf32>
    %15 = arith.truncf %14 : vector<8x128xf32> to vector<8x128xbf16>
    %c0_9 = arith.constant 0 : index
    %c0_10 = arith.constant 0 : index
    %16 = vector.load %arg5[%c0_9, %c0_10] : memref<128x128xbf16, #tpu.memory_space<vmem>>, vector<128x128xbf16>
    %cst_11 = arith.constant dense<0.000000e+00> : vector<8x128xf32>
    %17 = tpu.matmul %15, %16, %cst_11 {dimension_numbers = #tpu.dot_dimension_numbers<[1], [0], [0], [1], [0, 0, 1, 1], [], []>} : vector<8x128xbf16>, vector<128x128xbf16>, vector<8x128xf32> -> vector<8x128xf32>
    %c0_12 = arith.constant 0 : index
    %c0_13 = arith.constant 0 : index
    %18 = vector.load %arg6[%c0_12, %c0_13] : memref<1x128xf32, #tpu.memory_space<vmem>>, vector<1x128xf32>
    %19 = vector.broadcast %18 : vector<1x128xf32> to vector<8x128xf32>
    %20 = arith.addf %17, %19 : vector<8x128xf32>
    %cst_14 = arith.constant 0.000000e+00 : f32
    %21 = vector.broadcast %cst_14 : f32 to vector<8x128xf32>
    %22 = arith.cmpf ogt, %20, %21 : vector<8x128xf32>
    %cst_15 = arith.constant 2.000000e-01 : f32
    %23 = vector.broadcast %cst_15 : f32 to vector<8x128xf32>
    %24 = arith.mulf %23, %20 : vector<8x128xf32>
    %25 = arith.select %22, %20, %24 : vector<8x128xi1>, vector<8x128xf32>
    %26 = arith.truncf %25 : vector<8x128xf32> to vector<8x128xbf16>
    %c0_16 = arith.constant 0 : index
    %c0_17 = arith.constant 0 : index
    %27 = vector.load %arg7[%c0_16, %c0_17] : memref<128x128xbf16, #tpu.memory_space<vmem>>, vector<128x128xbf16>
    %cst_18 = arith.constant dense<0.000000e+00> : vector<8x128xf32>
    %28 = tpu.matmul %26, %27, %cst_18 {dimension_numbers = #tpu.dot_dimension_numbers<[1], [0], [0], [1], [0, 0, 1, 1], [], []>} : vector<8x128xbf16>, vector<128x128xbf16>, vector<8x128xf32> -> vector<8x128xf32>
    %c0_19 = arith.constant 0 : index
    %c0_20 = arith.constant 0 : index
    %29 = vector.load %arg8[%c0_19, %c0_20] : memref<1x128xf32, #tpu.memory_space<vmem>>, vector<1x128xf32>
    %30 = vector.broadcast %29 : vector<1x128xf32> to vector<8x128xf32>
    %31 = arith.addf %28, %30 : vector<8x128xf32>
    %cst_21 = arith.constant 0.000000e+00 : f32
    %32 = vector.broadcast %cst_21 : f32 to vector<8x128xf32>
    %33 = arith.cmpf ogt, %31, %32 : vector<8x128xf32>
    %cst_22 = arith.constant 2.000000e-01 : f32
    %34 = vector.broadcast %cst_22 : f32 to vector<8x128xf32>
    %35 = arith.mulf %34, %31 : vector<8x128xf32>
    %36 = arith.select %33, %31, %35 : vector<8x128xi1>, vector<8x128xf32>
    %37 = arith.truncf %36 : vector<8x128xf32> to vector<8x128xbf16>
    %c0_23 = arith.constant 0 : index
    %c0_24 = arith.constant 0 : index
    %38 = vector.load %arg9[%c0_23, %c0_24] : memref<128x128xbf16, #tpu.memory_space<vmem>>, vector<128x128xbf16>
    %cst_25 = arith.constant dense<0.000000e+00> : vector<8x128xf32>
    %39 = tpu.matmul %37, %38, %cst_25 {dimension_numbers = #tpu.dot_dimension_numbers<[1], [0], [0], [1], [0, 0, 1, 1], [], []>} : vector<8x128xbf16>, vector<128x128xbf16>, vector<8x128xf32> -> vector<8x128xf32>
    %c0_26 = arith.constant 0 : index
    %c0_27 = arith.constant 0 : index
    %40 = vector.load %arg10[%c0_26, %c0_27] : memref<1x128xf32, #tpu.memory_space<vmem>>, vector<1x128xf32>
    %41 = vector.broadcast %40 : vector<1x128xf32> to vector<8x128xf32>
    %42 = arith.addf %39, %41 : vector<8x128xf32>
    %cst_28 = arith.constant 0.000000e+00 : f32
    %43 = vector.broadcast %cst_28 : f32 to vector<8x128xf32>
    %44 = arith.cmpf ogt, %42, %43 : vector<8x128xf32>
    %cst_29 = arith.constant 2.000000e-01 : f32
    %45 = vector.broadcast %cst_29 : f32 to vector<8x128xf32>
    %46 = arith.mulf %45, %42 : vector<8x128xf32>
    %47 = arith.select %44, %42, %46 : vector<8x128xi1>, vector<8x128xf32>
    %48 = arith.truncf %47 : vector<8x128xf32> to vector<8x128xbf16>
    %c0_30 = arith.constant 0 : index
    %c0_31 = arith.constant 0 : index
    %49 = vector.load %arg11[%c0_30, %c0_31] : memref<128x128xbf16, #tpu.memory_space<vmem>>, vector<128x128xbf16>
    %cst_32 = arith.constant dense<0.000000e+00> : vector<8x128xf32>
    %50 = tpu.matmul %48, %49, %cst_32 {dimension_numbers = #tpu.dot_dimension_numbers<[1], [0], [0], [1], [0, 0, 1, 1], [], []>} : vector<8x128xbf16>, vector<128x128xbf16>, vector<8x128xf32> -> vector<8x128xf32>
    %c0_33 = arith.constant 0 : index
    %c0_34 = arith.constant 0 : index
    %51 = vector.load %arg12[%c0_33, %c0_34] : memref<1x128xf32, #tpu.memory_space<vmem>>, vector<1x128xf32>
    %52 = vector.broadcast %51 : vector<1x128xf32> to vector<8x128xf32>
    %53 = arith.addf %50, %52 : vector<8x128xf32>
    %cst_35 = arith.constant 0.000000e+00 : f32
    %54 = vector.broadcast %cst_35 : f32 to vector<8x128xf32>
    %55 = arith.maximumf %53, %54 : vector<8x128xf32>
    %56 = arith.truncf %55 : vector<8x128xf32> to vector<8x128xbf16>
    %c0_36 = arith.constant 0 : index
    %c0_37 = arith.constant 0 : index
    %57 = vector.load %arg13[%c0_36, %c0_37] : memref<8x128xbf16, #tpu.memory_space<vmem>>, vector<8x128xbf16>
    tpu.vector_store %arg13[%c0_36, %c0_37], %56 {strides = array<i32>} : memref<8x128xbf16, #tpu.memory_space<vmem>>, vector<8x128xbf16>,
    return
  }
  func.func @transform_0(%arg0: i32) -> (i32, i32) {
    %c0_i32 = arith.constant 0 : i32
    %c0_i32_0 = arith.constant 0 : i32
    return %arg0, %c0_i32 : i32, i32
  }
  func.func @transform_1(%arg0: i32) -> (i32, i32) {
    %c0_i32 = arith.constant 0 : i32
    %c0_i32_0 = arith.constant 0 : i32
    return %arg0, %c0_i32 : i32, i32
  }
  func.func @transform_2(%arg0: i32) -> (i32, i32) {
    %c0_i32 = arith.constant 0 : i32
    %c0_i32_0 = arith.constant 0 : i32
    %c0_i32_1 = arith.constant 0 : i32
    return %c0_i32, %c0_i32_0 : i32, i32
  }
  func.func @transform_3(%arg0: i32) -> (i32, i32) {
    %c0_i32 = arith.constant 0 : i32
    %c0_i32_0 = arith.constant 0 : i32
    %c0_i32_1 = arith.constant 0 : i32
    return %c0_i32, %c0_i32_0 : i32, i32
  }
  func.func @transform_4(%arg0: i32) -> (i32, i32) {
    %c0_i32 = arith.constant 0 : i32
    %c0_i32_0 = arith.constant 0 : i32
    %c0_i32_1 = arith.constant 0 : i32
    return %c0_i32, %c0_i32_0 : i32, i32
  }
  func.func @transform_5(%arg0: i32) -> (i32, i32) {
    %c0_i32 = arith.constant 0 : i32
    %c0_i32_0 = arith.constant 0 : i32
    %c0_i32_1 = arith.constant 0 : i32
    return %c0_i32, %c0_i32_0 : i32, i32
  }
  func.func @transform_6(%arg0: i32) -> (i32, i32) {
    %c0_i32 = arith.constant 0 : i32
    %c0_i32_0 = arith.constant 0 : i32
    %c0_i32_1 = arith.constant 0 : i32
    return %c0_i32, %c0_i32_0 : i32, i32
  }
  func.func @transform_7(%arg0: i32) -> (i32, i32) {
    %c0_i32 = arith.constant 0 : i32
    %c0_i32_0 = arith.constant 0 : i32
    %c0_i32_1 = arith.constant 0 : i32
    return %c0_i32, %c0_i32_0 : i32, i32
  }
  func.func @transform_8(%arg0: i32) -> (i32, i32) {
    %c0_i32 = arith.constant 0 : i32
    %c0_i32_0 = arith.constant 0 : i32
    %c0_i32_1 = arith.constant 0 : i32
    return %c0_i32, %c0_i32_0 : i32, i32
  }
  func.func @transform_9(%arg0: i32) -> (i32, i32) {
    %c0_i32 = arith.constant 0 : i32
    %c0_i32_0 = arith.constant 0 : i32
    %c0_i32_1 = arith.constant 0 : i32
    return %c0_i32, %c0_i32_0 : i32, i32
  }
  func.func @transform_10(%arg0: i32) -> (i32, i32) {
    %c0_i32 = arith.constant 0 : i32
    %c0_i32_0 = arith.constant 0 : i32
    %c0_i32_1 = arith.constant 0 : i32
    return %c0_i32, %c0_i32_0 : i32, i32
  }
  func.func @transform_11(%arg0: i32) -> (i32, i32) {
    %c0_i32 = arith.constant 0 : i32
    %c0_i32_0 = arith.constant 0 : i32
    %c0_i32_1 = arith.constant 0 : i32
    return %c0_i32, %c0_i32_0 : i32, i32
  }
  func.func @transform_12(%arg0: i32) -> (i32, i32) {
    %c0_i32 = arith.constant 0 : i32
    %c0_i32_0 = arith.constant 0 : i32
    return %arg0, %c0_i32 : i32, i32
  }
}

</mosaic_0001>

<llo_original>
// kernel: _forward.1
$region0: #{_forward.1}
  #allocation0 [shape = 'u32[]', space=smem, size = 0x4, offset = 0x4, fixed_abs, tag = 'smem constant byte address 0x4 - core index']
  #allocation1 [shape = 'u32[144,128]{1,0:T(1,128)}', space=vmem, size = 0x12000, scoped, tag = 'internal scratch']
  %s0 = inlined_call_operand.vmem [shape: f32[8,128], index: 0, kind: input, shape index: {}]
  %s1 = inlined_call_operand.vmem [shape: f32[8,128], index: 1, kind: input, shape index: {}]
  %s2 = inlined_call_operand.hbm [shape: bf16[256,128], index: 2, kind: input, shape index: {}]
  %s3 = inlined_call_operand.hbm [shape: f32[1,128], index: 3, kind: input, shape index: {}]
  %s4 = inlined_call_operand.hbm [shape: bf16[128,128], index: 4, kind: input, shape index: {}]
  %s5 = inlined_call_operand.hbm [shape: f32[1,128], index: 5, kind: input, shape index: {}]
  %s6 = inlined_call_operand.hbm [shape: bf16[128,128], index: 6, kind: input, shape index: {}]
  %s7 = inlined_call_operand.hbm [shape: f32[1,128], index: 7, kind: input, shape index: {}]
  %s8 = inlined_call_operand.vmem [shape: bf16[128,128], index: 8, kind: input, shape index: {}]
  %s9 = inlined_call_operand.vmem [shape: f32[1,128], index: 9, kind: input, shape index: {}]
  %s10 = inlined_call_operand.hbm [shape: bf16[128,128], index: 10, kind: input, shape index: {}]
  %s11 = inlined_call_operand.vmem [shape: f32[1,128], index: 11, kind: input, shape index: {}]
  %s12 = inlined_call_operand.hbm [shape: bf16[8,128], index: 12, kind: output, shape index: {}]
  %s13 = sld [smem:[#allocation0]]
  $region86: #{_forward.1} parent=0
    _
  %s15 = ssub.s32 1, %s13
  %s16 = scalar_select 0, %s15, %s13
  $region1: #{_forward.1} parent=0
    #allocation2 [shape = 'u8[65536]{0}', space=vmem, size = 0x10000, scoped, tag = 'input window, operand 2, single buffered']
    #allocation3 [shape = 's32[1]{0}', space=sflag, size = 0x4, scoped, tag = 'scoped memory for _forward.1']
    #allocation4 [shape = 's32[1]{0}', space=sflag, size = 0x4, scoped, tag = 'scoped memory for _forward.1']
    #allocation5 [shape = 'u8[512]{0}', space=vmem, size = 0x400, scoped, tag = 'input window, operand 3, single buffered']
    #allocation6 [shape = 's32[1]{0}', space=sflag, size = 0x4, scoped, tag = 'scoped memory for _forward.1']
    #allocation7 [shape = 'u8[32768]{0}', space=vmem, size = 0x8000, scoped, tag = 'input window, operand 4, single buffered']
    #allocation8 [shape = 'u8[512]{0}', space=vmem, size = 0x400, scoped, tag = 'input window, operand 5, single buffered']
    #allocation9 [shape = 's32[1]{0}', space=sflag, size = 0x4, scoped, tag = 'scoped memory for _forward.1']
    #allocation10 [shape = 'u8[32768]{0}', space=vmem, size = 0x8000, scoped, tag = 'input window, operand 6, single buffered']
    #allocation11 [shape = 'u8[512]{0}', space=vmem, size = 0x400, scoped, tag = 'input window, operand 7, single buffered']
    #allocation12 [shape = 's32[1]{0}', space=sflag, size = 0x4, scoped, tag = 'scoped memory for _forward.1']
    #allocation13 [shape = 'u8[32768]{0}', space=vmem, size = 0x8000, scoped, tag = 'input window, operand 10, single buffered']
    #allocation14 [shape = 'u8[2048]{0}', space=vmem, size = 0x800, scoped, tag = 'output window, operand 0, single buffered']
    %17 = vsyncpa [#allocation3], 0
    %18 = vsyncpa [#allocation6], 0
    %19 = vsyncpa [#allocation9], 0
    %20 = vsyncpa [#allocation12], 0
    %21 = vsyncpa [#allocation4], 0
    // Predicated region
    $region2: #{_forward.1} parent=1 // pred_check
      _
    $region3: #{_forward.1} parent=1 // pred_check_branch
      %23 = sbr.rel (0) target = $region5
    $region4: #{_forward.1} parent=1 // pred_region
      _
    $region5: #{_forward.1} parent=1 // pred_fallthru
      _
    // Predicated region
    $region6: #{_forward.1} parent=1 // pred_check
      _
    $region7: #{_forward.1} parent=1 // pred_check_branch
      %25 = sbr.rel (0) target = $region9
    $region8: #{_forward.1} parent=1 // pred_region
      _
    $region9: #{_forward.1} parent=1 // pred_fallthru
      _
    // Predicated region
    $region10: #{_forward.1} parent=1 // pred_check
      _
    $region11: #{_forward.1} parent=1 // pred_check_branch
      %27 = sbr.rel (0) target = $region13
    $region12: #{_forward.1} parent=1 // pred_region
      %s29 = ssub.s32 2048, 2048
      %30 = vsyncadd [#allocation3], %s29
      %s31 = sshll.u32 [#allocation2], 4
      %s32 = int_to_ptr.vmem [resolvable:$true] %s31
      %37 = dma.hbm_to_vmem [thread:$0]  %s2, 2048, %s32, [#allocation3], 64, 64, 4
    $region13: #{_forward.1} parent=1 // pred_fallthru
      _
    // Predicated region
    $region14: #{_forward.1} parent=1 // pred_check
      _
    $region15: #{_forward.1} parent=1 // pred_check_branch
      %39 = sbr.rel (0) target = $region17
    $region16: #{_forward.1} parent=1 // pred_region
      %s41 = ssub.s32 16, 16
      %42 = vsyncadd [#allocation6], %s41
      %s44 = sshll.u32 [#allocation5], 4
      %s45 = int_to_ptr.vmem [resolvable:$true] %s44
      %47 = dma.hbm_to_vmem [thread:$0]  %s3, 16, %s45, [#allocation6]
    $region17: #{_forward.1} parent=1 // pred_fallthru
      _
    // Predicated region
    $region18: #{_forward.1} parent=1 // pred_check
      _
    $region19: #{_forward.1} parent=1 // pred_check_branch
      %49 = sbr.rel (0) target = $region21
    $region20: #{_forward.1} parent=1 // pred_region
      %s51 = ssub.s32 1024, 1024
      %52 = vsyncadd [#allocation6], %s51
      %s53 = sshll.u32 [#allocation7], 4
      %s54 = int_to_ptr.vmem [resolvable:$true] %s53
      %59 = dma.hbm_to_vmem [thread:$0]  %s4, 1024, %s54, [#allocation6], 64, 64, 4
    $region21: #{_forward.1} parent=1 // pred_fallthru
      _
    // Predicated region
    $region22: #{_forward.1} parent=1 // pred_check
      _
    $region23: #{_forward.1} parent=1 // pred_check_branch
      %61 = sbr.rel (0) target = $region25
    $region24: #{_forward.1} parent=1 // pred_region
      %s63 = ssub.s32 16, 16
      %64 = vsyncadd [#allocation9], %s63
      %s66 = sshll.u32 [#allocation8], 4
      %s67 = int_to_ptr.vmem [resolvable:$true] %s66
      %69 = dma.hbm_to_vmem [thread:$0]  %s5, 16, %s67, [#allocation9]
    $region25: #{_forward.1} parent=1 // pred_fallthru
      _
    // Predicated region
    $region26: #{_forward.1} parent=1 // pred_check
      _
    $region27: #{_forward.1} parent=1 // pred_check_branch
      %71 = sbr.rel (0) target = $region29
    $region28: #{_forward.1} parent=1 // pred_region
      %s73 = ssub.s32 1024, 1024
      %74 = vsyncadd [#allocation9], %s73
      %s75 = sshll.u32 [#allocation10], 4
      %s76 = int_to_ptr.vmem [resolvable:$true] %s75
      %81 = dma.hbm_to_vmem [thread:$0]  %s6, 1024, %s76, [#allocation9], 64, 64, 4
    $region29: #{_forward.1} parent=1 // pred_fallthru
      _
    // Predicated region
    $region30: #{_forward.1} parent=1 // pred_check
      _
    $region31: #{_forward.1} parent=1 // pred_check_branch
      %83 = sbr.rel (0) target = $region33
    $region32: #{_forward.1} parent=1 // pred_region
      %s85 = ssub.s32 16, 16
      %86 = vsyncadd [#allocation12], %s85
      %s88 = sshll.u32 [#allocation11], 4
      %s89 = int_to_ptr.vmem [resolvable:$true] %s88
      %91 = dma.hbm_to_vmem [thread:$0]  %s7, 16, %s89, [#allocation12]
    $region33: #{_forward.1} parent=1 // pred_fallthru
      _
    // Predicated region
    $region34: #{_forward.1} parent=1 // pred_check
      _
    $region35: #{_forward.1} parent=1 // pred_check_branch
      %93 = sbr.rel (0) target = $region37
    $region36: #{_forward.1} parent=1 // pred_region
      _
    $region37: #{_forward.1} parent=1 // pred_fallthru
      _
    // Predicated region
    $region38: #{_forward.1} parent=1 // pred_check
      _
    $region39: #{_forward.1} parent=1 // pred_check_branch
      %95 = sbr.rel (0) target = $region41
    $region40: #{_forward.1} parent=1 // pred_region
      _
    $region41: #{_forward.1} parent=1 // pred_fallthru
      _
    // Predicated region
    $region42: #{_forward.1} parent=1 // pred_check
      _
    $region43: #{_forward.1} parent=1 // pred_check_branch
      %97 = sbr.rel (0) target = $region45
    $region44: #{_forward.1} parent=1 // pred_region
      %s99 = ssub.s32 1024, 1024
      %100 = vsyncadd [#allocation12], %s99
      %s101 = sshll.u32 [#allocation13], 4
      %s102 = int_to_ptr.vmem [resolvable:$true] %s101
      %107 = dma.hbm_to_vmem [thread:$0]  %s10, 1024, %s102, [#allocation12], 64, 64, 4
    $region45: #{_forward.1} parent=1 // pred_fallthru
      _
    // Predicated region
    $region46: #{_forward.1} parent=1 // pred_check
      _
    $region47: #{_forward.1} parent=1 // pred_check_branch
      %109 = sbr.rel (0) target = $region49
    $region48: #{_forward.1} parent=1 // pred_region
      _
    $region49: #{_forward.1} parent=1 // pred_fallthru
      _
    // Predicated region
    $region50: #{_forward.1} parent=1 // pred_check
      _
    $region51: #{_forward.1} parent=1 // pred_check_branch
      %111 = sbr.rel (0) target = $region53
    $region52: #{_forward.1} parent=1 // pred_region
      %112 = dma.done [#allocation3], 2048
    $region53: #{_forward.1} parent=1 // pred_fallthru
      _
    // Predicated region
    $region54: #{_forward.1} parent=1 // pred_check
      _
    $region55: #{_forward.1} parent=1 // pred_check_branch
      %114 = sbr.rel (0) target = $region57
    $region56: #{_forward.1} parent=1 // pred_region
      %115 = dma.done [#allocation6], 16
    $region57: #{_forward.1} parent=1 // pred_fallthru
      _
    // Predicated region
    $region58: #{_forward.1} parent=1 // pred_check
      _
    $region59: #{_forward.1} parent=1 // pred_check_branch
      %117 = sbr.rel (0) target = $region61
    $region60: #{_forward.1} parent=1 // pred_region
      %118 = dma.done [#allocation6], 1024
    $region61: #{_forward.1} parent=1 // pred_fallthru
      _
    // Predicated region
    $region62: #{_forward.1} parent=1 // pred_check
      _
    $region63: #{_forward.1} parent=1 // pred_check_branch
      %120 = sbr.rel (0) target = $region65
    $region64: #{_forward.1} parent=1 // pred_region
      %121 = dma.done [#allocation9], 16
    $region65: #{_forward.1} parent=1 // pred_fallthru
      _
    // Predicated region
    $region66: #{_forward.1} parent=1 // pred_check
      _
    $region67: #{_forward.1} parent=1 // pred_check_branch
      %123 = sbr.rel (0) target = $region69
    $region68: #{_forward.1} parent=1 // pred_region
      %124 = dma.done [#allocation9], 1024
    $region69: #{_forward.1} parent=1 // pred_fallthru
      _
    // Predicated region
    $region70: #{_forward.1} parent=1 // pred_check
      _
    $region71: #{_forward.1} parent=1 // pred_check_branch
      %126 = sbr.rel (0) target = $region73
    $region72: #{_forward.1} parent=1 // pred_region
      %127 = dma.done [#allocation12], 16
    $region73: #{_forward.1} parent=1 // pred_fallthru
      _
    // Predicated region
    $region74: #{_forward.1} parent=1 // pred_check
      _
    $region75: #{_forward.1} parent=1 // pred_check_branch
      %129 = sbr.rel (0) target = $region77
    $region76: #{_forward.1} parent=1 // pred_region
      %130 = dma.done [#allocation12], 1024
    $region77: #{_forward.1} parent=1 // pred_fallthru
      _
    %v132 = vld [vmem:[%s0] sm:$0xff]
    %v133 = vpack.c.bf16 %v132, %v132
    %v134 = vld [vmem:[%s1] sm:$0xff]
    %v135 = vpack.c.bf16 %v134, %v134
    %v136 = vld [vmem:[#allocation2] sm:$0xf]
    %v137 = vld [vmem:[#allocation2 + $0x4] sm:$0xf]
    %v138 = vld [vmem:[#allocation2 + $0x8] sm:$0xf]
    %v139 = vld [vmem:[#allocation2 + $0xc] sm:$0xf]
    %v140 = vld [vmem:[#allocation2 + $0x10] sm:$0xf]
    %v141 = vld [vmem:[#allocation2 + $0x14] sm:$0xf]
    %v142 = vld [vmem:[#allocation2 + $0x18] sm:$0xf]
    %v143 = vld [vmem:[#allocation2 + $0x1c] sm:$0xf]
    %v144 = vld [vmem:[#allocation2 + $0x20] sm:$0xf]
    %v145 = vld [vmem:[#allocation2 + $0x24] sm:$0xf]
    %v146 = vld [vmem:[#allocation2 + $0x28] sm:$0xf]
    %v147 = vld [vmem:[#allocation2 + $0x2c] sm:$0xf]
    %v148 = vld [vmem:[#allocation2 + $0x30] sm:$0xf]
    %v149 = vld [vmem:[#allocation2 + $0x34] sm:$0xf]
    %v150 = vld [vmem:[#allocation2 + $0x38] sm:$0xf]
    %v151 = vld [vmem:[#allocation2 + $0x3c] sm:$0xf]
    %v152 = vld [vmem:[#allocation2 + $0x40] sm:$0xf]
    %v153 = vld [vmem:[#allocation2 + $0x44] sm:$0xf]
    %v154 = vld [vmem:[#allocation2 + $0x48] sm:$0xf]
    %v155 = vld [vmem:[#allocation2 + $0x4c] sm:$0xf]
    %v156 = vld [vmem:[#allocation2 + $0x50] sm:$0xf]
    %v157 = vld [vmem:[#allocation2 + $0x54] sm:$0xf]
    %v158 = vld [vmem:[#allocation2 + $0x58] sm:$0xf]
    %v159 = vld [vmem:[#allocation2 + $0x5c] sm:$0xf]
    %v160 = vld [vmem:[#allocation2 + $0x60] sm:$0xf]
    %v161 = vld [vmem:[#allocation2 + $0x64] sm:$0xf]
    %v162 = vld [vmem:[#allocation2 + $0x68] sm:$0xf]
    %v163 = vld [vmem:[#allocation2 + $0x6c] sm:$0xf]
    %v164 = vld [vmem:[#allocation2 + $0x70] sm:$0xf]
    %v165 = vld [vmem:[#allocation2 + $0x74] sm:$0xf]
    %v166 = vld [vmem:[#allocation2 + $0x78] sm:$0xf]
    %v167 = vld [vmem:[#allocation2 + $0x7c] sm:$0xf]
    %v168 = vld [vmem:[#allocation5] sm:$0x1]
    %v170 = vlaneseq
    %v171 = vshrl.u32 %v170, 7
    %v172 = vsub.s32 0, %v171
    %v173 = vrot.slane %v168, %v172
    %v207 = vunpack.c.l.b16 %v136
    %v208 = vunpack.c.l.b16 %v137
    %v209 = vunpack.c.l.b16 %v138
    %v210 = vunpack.c.l.b16 %v139
    %v211 = vunpack.c.l.b16 %v140
    %v212 = vunpack.c.l.b16 %v141
    %v213 = vunpack.c.l.b16 %v142
    %v214 = vunpack.c.l.b16 %v143
    %v215 = vunpack.c.l.b16 %v144
    %v216 = vunpack.c.l.b16 %v145
    %v217 = vunpack.c.l.b16 %v146
    %v218 = vunpack.c.l.b16 %v147
    %v219 = vunpack.c.l.b16 %v148
    %v220 = vunpack.c.l.b16 %v149
    %v221 = vunpack.c.l.b16 %v150
    %v222 = vunpack.c.l.b16 %v151
    %v223 = vunpack.c.l.b16 %v152
    %v224 = vunpack.c.l.b16 %v153
    %v225 = vunpack.c.l.b16 %v154
    %v226 = vunpack.c.l.b16 %v155
    %v227 = vunpack.c.l.b16 %v156
    %v228 = vunpack.c.l.b16 %v157
    %v229 = vunpack.c.l.b16 %v158
    %v230 = vunpack.c.l.b16 %v159
    %v231 = vunpack.c.l.b16 %v160
    %v232 = vunpack.c.l.b16 %v161
    %v233 = vunpack.c.l.b16 %v162
    %v234 = vunpack.c.l.b16 %v163
    %v235 = vunpack.c.l.b16 %v164
    %v236 = vunpack.c.l.b16 %v165
    %v237 = vunpack.c.l.b16 %v166
    %v238 = vunpack.c.l.b16 %v167
    %v239 = vpack.c.b16 %v208, %v207
    %v240 = vpack.c.b16 %v210, %v209
    %v241 = vpack.c.b16 %v212, %v211
    %v242 = vpack.c.b16 %v214, %v213
    %v243 = vpack.c.b16 %v216, %v215
    %v244 = vpack.c.b16 %v218, %v217
    %v245 = vpack.c.b16 %v220, %v219
    %v246 = vpack.c.b16 %v222, %v221
    %v247 = vpack.c.b16 %v224, %v223
    %v248 = vpack.c.b16 %v226, %v225
    %v249 = vpack.c.b16 %v228, %v227
    %v250 = vpack.c.b16 %v230, %v229
    %v251 = vpack.c.b16 %v232, %v231
    %v252 = vpack.c.b16 %v234, %v233
    %v253 = vpack.c.b16 %v236, %v235
    %v254 = vpack.c.b16 %v238, %v237
    %271 = vmatprep.subr.bf16.mxu0 0
    %272 = vmatpush1.bf16.msra.mxu0 %v239
    %273 = vmatprep.subr.bf16.mxu0 0
    %274 = vmatpush1.bf16.msra.mxu0 %v240
    %275 = vmatprep.subr.bf16.mxu0 0
    %276 = vmatpush1.bf16.msra.mxu0 %v241
    %277 = vmatprep.subr.bf16.mxu0 0
    %278 = vmatpush1.bf16.msra.mxu0 %v242
    %279 = vmatprep.subr.bf16.mxu0 0
    %280 = vmatpush1.bf16.msra.mxu0 %v243
    %281 = vmatprep.subr.bf16.mxu0 0
    %282 = vmatpush1.bf16.msra.mxu0 %v244
    %283 = vmatprep.subr.bf16.mxu0 0
    %284 = vmatpush1.bf16.msra.mxu0 %v245
    %285 = vmatprep.subr.bf16.mxu0 0
    %286 = vmatpush1.bf16.msra.mxu0 %v246
    %287 = vmatprep.subr.bf16.mxu0 0
    %288 = vmatpush1.bf16.msra.mxu0 %v247
    %289 = vmatprep.subr.bf16.mxu0 0
    %290 = vmatpush1.bf16.msra.mxu0 %v248
    %291 = vmatprep.subr.bf16.mxu0 0
    %292 = vmatpush1.bf16.msra.mxu0 %v249
    %293 = vmatprep.subr.bf16.mxu0 0
    %294 = vmatpush1.bf16.msra.mxu0 %v250
    %295 = vmatprep.subr.bf16.mxu0 0
    %296 = vmatpush1.bf16.msra.mxu0 %v251
    %297 = vmatprep.subr.bf16.mxu0 0
    %298 = vmatpush1.bf16.msra.mxu0 %v252
    %299 = vmatprep.subr.bf16.mxu0 0
    %300 = vmatpush1.bf16.msra.mxu0 %v253
    %301 = vmatprep.subr.bf16.mxu0 0
    %302 = vmatpush1.bf16.msra.mxu0 %v254
    %303 = vmatprep.mubr.bf16.mxu0 %v135
    %304 = vmatmul.mubr.bf16.gmra.mrb[0].mxu0 %v133
    %v305 = vpop.f32.mrb[0].mxu0
    %v306 = vadd.f32 %v173, %v305
    %v307 = vpop.f32.mrb[0].mxu0
    %v308 = vpop.f32.mrb[0].mxu0
    %v309 = vpop.f32.mrb[0].mxu0
    %310 = vdwg.mxu0
    %vm311 = vcmp.gt.f32.partialorder %v306, 0.0
    %v312 = vmul.f32 %v306, 0.2
    %v313 = vsel %vm311, %v306, %v312
    %v314 = vpack.c.bf16 %v313, %v313
    %v315 = vld [vmem:[#allocation7] sm:$0xf]
    %v316 = vld [vmem:[#allocation7 + $0x4] sm:$0xf]
    %v317 = vld [vmem:[#allocation7 + $0x8] sm:$0xf]
    %v318 = vld [vmem:[#allocation7 + $0xc] sm:$0xf]
    %v319 = vld [vmem:[#allocation7 + $0x10] sm:$0xf]
    %v320 = vld [vmem:[#allocation7 + $0x14] sm:$0xf]
    %v321 = vld [vmem:[#allocation7 + $0x18] sm:$0xf]
    %v322 = vld [vmem:[#allocation7 + $0x1c] sm:$0xf]
    %v323 = vld [vmem:[#allocation7 + $0x20] sm:$0xf]
    %v324 = vld [vmem:[#allocation7 + $0x24] sm:$0xf]
    %v325 = vld [vmem:[#allocation7 + $0x28] sm:$0xf]
    %v326 = vld [vmem:[#allocation7 + $0x2c] sm:$0xf]
    %v327 = vld [vmem:[#allocation7 + $0x30] sm:$0xf]
    %v328 = vld [vmem:[#allocation7 + $0x34] sm:$0xf]
    %v329 = vld [vmem:[#allocation7 + $0x38] sm:$0xf]
    %v330 = vld [vmem:[#allocation7 + $0x3c] sm:$0xf]
    %v331 = vld [vmem:[#allocation8] sm:$0x1]
    %v333 = vlaneseq
    %v334 = vshrl.u32 %v333, 7
    %v335 = vsub.s32 0, %v334
    %v336 = vrot.slane %v331, %v335
    %v354 = vunpack.c.l.b16 %v315
    %v355 = vunpack.c.l.b16 %v316
    %v356 = vunpack.c.l.b16 %v317
    %v357 = vunpack.c.l.b16 %v318
    %v358 = vunpack.c.l.b16 %v319
    %v359 = vunpack.c.l.b16 %v320
    %v360 = vunpack.c.l.b16 %v321
    %v361 = vunpack.c.l.b16 %v322
    %v362 = vunpack.c.l.b16 %v323
    %v363 = vunpack.c.l.b16 %v324
    %v364 = vunpack.c.l.b16 %v325
    %v365 = vunpack.c.l.b16 %v326
    %v366 = vunpack.c.l.b16 %v327
    %v367 = vunpack.c.l.b16 %v328
    %v368 = vunpack.c.l.b16 %v329
    %v369 = vunpack.c.l.b16 %v330
    %v370 = vpack.c.b16 %v355, %v354
    %v371 = vpack.c.b16 %v357, %v356
    %v372 = vpack.c.b16 %v359, %v358
    %v373 = vpack.c.b16 %v361, %v360
    %v374 = vpack.c.b16 %v363, %v362
    %v375 = vpack.c.b16 %v365, %v364
    %v376 = vpack.c.b16 %v367, %v366
    %v377 = vpack.c.b16 %v369, %v368
    %386 = vmatprep.subr.bf16.mxu0 0
    %387 = vmatpush1.bf16.msra.mxu0 %v370
    %388 = vmatprep.subr.bf16.mxu0 0
    %389 = vmatpush1.bf16.msra.mxu0 %v371
    %390 = vmatprep.subr.bf16.mxu0 0
    %391 = vmatpush1.bf16.msra.mxu0 %v372
    %392 = vmatprep.subr.bf16.mxu0 0
    %393 = vmatpush1.bf16.msra.mxu0 %v373
    %394 = vmatprep.subr.bf16.mxu0 0
    %395 = vmatpush1.bf16.msra.mxu0 %v374
    %396 = vmatprep.subr.bf16.mxu0 0
    %397 = vmatpush1.bf16.msra.mxu0 %v375
    %398 = vmatprep.subr.bf16.mxu0 0
    %399 = vmatpush1.bf16.msra.mxu0 %v376
    %400 = vmatprep.subr.bf16.mxu0 0
    %401 = vmatpush1.bf16.msra.mxu0 %v377
    %402 = vmatprep.subr.bf16.mxu0 0
    %403 = vmatpush1.bf16.msra.mxu0 0
    %404 = vmatprep.subr.bf16.mxu0 0
    %405 = vmatpush1.bf16.msra.mxu0 0
    %406 = vmatprep.subr.bf16.mxu0 0
    %407 = vmatpush1.bf16.msra.mxu0 0
    %408 = vmatprep.subr.bf16.mxu0 0
    %409 = vmatpush1.bf16.msra.mxu0 0
    %410 = vmatprep.subr.bf16.mxu0 0
    %411 = vmatpush1.bf16.msra.mxu0 0
    %412 = vmatprep.subr.bf16.mxu0 0
    %413 = vmatpush1.bf16.msra.mxu0 0
    %414 = vmatprep.subr.bf16.mxu0 0
    %415 = vmatpush1.bf16.msra.mxu0 0
    %416 = vmatprep.subr.bf16.mxu0 0
    %417 = vmatpush1.bf16.msra.mxu0 0
    %418 = vmatprep.mubr.bf16.mxu0 0
    %419 = vmatmul.mubr.bf16.gmra.mrb[0].mxu0 %v314
    %v420 = vpop.f32.mrb[0].mxu0
    %v421 = vadd.f32 %v336, %v420
    %v422 = vpop.f32.mrb[0].mxu0
    %v423 = vpop.f32.mrb[0].mxu0
    %v424 = vpop.f32.mrb[0].mxu0
    %425 = vdwg.mxu0
    %vm426 = vcmp.gt.f32.partialorder %v421, 0.0
    %v427 = vmul.f32 %v421, 0.2
    %v428 = vsel %vm426, %v421, %v427
    %v429 = vpack.c.bf16 %v428, %v428
    %v430 = vld [vmem:[#allocation10] sm:$0xf]
    %v431 = vld [vmem:[#allocation10 + $0x4] sm:$0xf]
    %v432 = vld [vmem:[#allocation10 + $0x8] sm:$0xf]
    %v433 = vld [vmem:[#allocation10 + $0xc] sm:$0xf]
    %v434 = vld [vmem:[#allocation10 + $0x10] sm:$0xf]
    %v435 = vld [vmem:[#allocation10 + $0x14] sm:$0xf]
    %v436 = vld [vmem:[#allocation10 + $0x18] sm:$0xf]
    %v437 = vld [vmem:[#allocation10 + $0x1c] sm:$0xf]
    %v438 = vld [vmem:[#allocation10 + $0x20] sm:$0xf]
    %v439 = vld [vmem:[#allocation10 + $0x24] sm:$0xf]
    %v440 = vld [vmem:[#allocation10 + $0x28] sm:$0xf]
    %v441 = vld [vmem:[#allocation10 + $0x2c] sm:$0xf]
    %v442 = vld [vmem:[#allocation10 + $0x30] sm:$0xf]
    %v443 = vld [vmem:[#allocation10 + $0x34] sm:$0xf]
    %v444 = vld [vmem:[#allocation10 + $0x38] sm:$0xf]
    %v445 = vld [vmem:[#allocation10 + $0x3c] sm:$0xf]
    %v446 = vld [vmem:[#allocation11] sm:$0x1]
    %v448 = vlaneseq
    %v449 = vshrl.u32 %v448, 7
    %v450 = vsub.s32 0, %v449
    %v451 = vrot.slane %v446, %v450
    %v469 = vunpack.c.l.b16 %v430
    %v470 = vunpack.c.l.b16 %v431
    %v471 = vunpack.c.l.b16 %v432
    %v472 = vunpack.c.l.b16 %v433
    %v473 = vunpack.c.l.b16 %v434
    %v474 = vunpack.c.l.b16 %v435
    %v475 = vunpack.c.l.b16 %v436
    %v476 = vunpack.c.l.b16 %v437
    %v477 = vunpack.c.l.b16 %v438
    %v478 = vunpack.c.l.b16 %v439
    %v479 = vunpack.c.l.b16 %v440
    %v480 = vunpack.c.l.b16 %v441
    %v481 = vunpack.c.l.b16 %v442
    %v482 = vunpack.c.l.b16 %v443
    %v483 = vunpack.c.l.b16 %v444
    %v484 = vunpack.c.l.b16 %v445
    %v485 = vpack.c.b16 %v470, %v469
    %v486 = vpack.c.b16 %v472, %v471
    %v487 = vpack.c.b16 %v474, %v473
    %v488 = vpack.c.b16 %v476, %v475
    %v489 = vpack.c.b16 %v478, %v477
    %v490 = vpack.c.b16 %v480, %v479
    %v491 = vpack.c.b16 %v482, %v481
    %v492 = vpack.c.b16 %v484, %v483
    %501 = vmatprep.subr.bf16.mxu0 0
    %502 = vmatpush1.bf16.msra.mxu0 %v485
    %503 = vmatprep.subr.bf16.mxu0 0
    %504 = vmatpush1.bf16.msra.mxu0 %v486
    %505 = vmatprep.subr.bf16.mxu0 0
    %506 = vmatpush1.bf16.msra.mxu0 %v487
    %507 = vmatprep.subr.bf16.mxu0 0
    %508 = vmatpush1.bf16.msra.mxu0 %v488
    %509 = vmatprep.subr.bf16.mxu0 0
    %510 = vmatpush1.bf16.msra.mxu0 %v489
    %511 = vmatprep.subr.bf16.mxu0 0
    %512 = vmatpush1.bf16.msra.mxu0 %v490
    %513 = vmatprep.subr.bf16.mxu0 0
    %514 = vmatpush1.bf16.msra.mxu0 %v491
    %515 = vmatprep.subr.bf16.mxu0 0
    %516 = vmatpush1.bf16.msra.mxu0 %v492
    %517 = vmatprep.subr.bf16.mxu0 0
    %518 = vmatpush1.bf16.msra.mxu0 0
    %519 = vmatprep.subr.bf16.mxu0 0
    %520 = vmatpush1.bf16.msra.mxu0 0
    %521 = vmatprep.subr.bf16.mxu0 0
    %522 = vmatpush1.bf16.msra.mxu0 0
    %523 = vmatprep.subr.bf16.mxu0 0
    %524 = vmatpush1.bf16.msra.mxu0 0
    %525 = vmatprep.subr.bf16.mxu0 0
    %526 = vmatpush1.bf16.msra.mxu0 0
    %527 = vmatprep.subr.bf16.mxu0 0
    %528 = vmatpush1.bf16.msra.mxu0 0
    %529 = vmatprep.subr.bf16.mxu0 0
    %530 = vmatpush1.bf16.msra.mxu0 0
    %531 = vmatprep.subr.bf16.mxu0 0
    %532 = vmatpush1.bf16.msra.mxu0 0
    %533 = vmatprep.mubr.bf16.mxu0 0
    %534 = vmatmul.mubr.bf16.gmra.mrb[0].mxu0 %v429
    %v535 = vpop.f32.mrb[0].mxu0
    %v536 = vadd.f32 %v451, %v535
    %v537 = vpop.f32.mrb[0].mxu0
    %v538 = vpop.f32.mrb[0].mxu0
    %v539 = vpop.f32.mrb[0].mxu0
    %540 = vdwg.mxu0
    %vm541 = vcmp.gt.f32.partialorder %v536, 0.0
    %v542 = vmul.f32 %v536, 0.2
    %v543 = vsel %vm541, %v536, %v542
    %v544 = vpack.c.bf16 %v543, %v543
    %v545 = vld [vmem:[%s8] sm:$0xf]
    %v546 = vld [vmem:[%s8 + $0x4] sm:$0xf]
    %v547 = vld [vmem:[%s8 + $0x8] sm:$0xf]
    %v548 = vld [vmem:[%s8 + $0xc] sm:$0xf]
    %v549 = vld [vmem:[%s8 + $0x10] sm:$0xf]
    %v550 = vld [vmem:[%s8 + $0x14] sm:$0xf]
    %v551 = vld [vmem:[%s8 + $0x18] sm:$0xf]
    %v552 = vld [vmem:[%s8 + $0x1c] sm:$0xf]
    %v553 = vld [vmem:[%s8 + $0x20] sm:$0xf]
    %v554 = vld [vmem:[%s8 + $0x24] sm:$0xf]
    %v555 = vld [vmem:[%s8 + $0x28] sm:$0xf]
    %v556 = vld [vmem:[%s8 + $0x2c] sm:$0xf]
    %v557 = vld [vmem:[%s8 + $0x30] sm:$0xf]
    %v558 = vld [vmem:[%s8 + $0x34] sm:$0xf]
    %v559 = vld [vmem:[%s8 + $0x38] sm:$0xf]
    %v560 = vld [vmem:[%s8 + $0x3c] sm:$0xf]
    %v561 = vld [vmem:[%s9] sm:$0x1]
    %v563 = vlaneseq
    %v564 = vshrl.u32 %v563, 7
    %v565 = vsub.s32 0, %v564
    %v566 = vrot.slane %v561, %v565
    %v584 = vunpack.c.l.b16 %v545
    %v585 = vunpack.c.l.b16 %v546
    %v586 = vunpack.c.l.b16 %v547
    %v587 = vunpack.c.l.b16 %v548
    %v588 = vunpack.c.l.b16 %v549
    %v589 = vunpack.c.l.b16 %v550
    %v590 = vunpack.c.l.b16 %v551
    %v591 = vunpack.c.l.b16 %v552
    %v592 = vunpack.c.l.b16 %v553
    %v593 = vunpack.c.l.b16 %v554
    %v594 = vunpack.c.l.b16 %v555
    %v595 = vunpack.c.l.b16 %v556
    %v596 = vunpack.c.l.b16 %v557
    %v597 = vunpack.c.l.b16 %v558
    %v598 = vunpack.c.l.b16 %v559
    %v599 = vunpack.c.l.b16 %v560
    %v600 = vpack.c.b16 %v585, %v584
    %v601 = vpack.c.b16 %v587, %v586
    %v602 = vpack.c.b16 %v589, %v588
    %v603 = vpack.c.b16 %v591, %v590
    %v604 = vpack.c.b16 %v593, %v592
    %v605 = vpack.c.b16 %v595, %v594
    %v606 = vpack.c.b16 %v597, %v596
    %v607 = vpack.c.b16 %v599, %v598
    %616 = vmatprep.subr.bf16.mxu0 0
    %617 = vmatpush1.bf16.msra.mxu0 %v600
    %618 = vmatprep.subr.bf16.mxu0 0
    %619 = vmatpush1.bf16.msra.mxu0 %v601
    %620 = vmatprep.subr.bf16.mxu0 0
    %621 = vmatpush1.bf16.msra.mxu0 %v602
    %622 = vmatprep.subr.bf16.mxu0 0
    %623 = vmatpush1.bf16.msra.mxu0 %v603
    %624 = vmatprep.subr.bf16.mxu0 0
    %625 = vmatpush1.bf16.msra.mxu0 %v604
    %626 = vmatprep.subr.bf16.mxu0 0
    %627 = vmatpush1.bf16.msra.mxu0 %v605
    %628 = vmatprep.subr.bf16.mxu0 0
    %629 = vmatpush1.bf16.msra.mxu0 %v606
    %630 = vmatprep.subr.bf16.mxu0 0
    %631 = vmatpush1.bf16.msra.mxu0 %v607
    %632 = vmatprep.subr.bf16.mxu0 0
    %633 = vmatpush1.bf16.msra.mxu0 0
    %634 = vmatprep.subr.bf16.mxu0 0
    %635 = vmatpush1.bf16.msra.mxu0 0
    %636 = vmatprep.subr.bf16.mxu0 0
    %637 = vmatpush1.bf16.msra.mxu0 0
    %638 = vmatprep.subr.bf16.mxu0 0
    %639 = vmatpush1.bf16.msra.mxu0 0
    %640 = vmatprep.subr.bf16.mxu0 0
    %641 = vmatpush1.bf16.msra.mxu0 0
    %642 = vmatprep.subr.bf16.mxu0 0
    %643 = vmatpush1.bf16.msra.mxu0 0
    %644 = vmatprep.subr.bf16.mxu0 0
    %645 = vmatpush1.bf16.msra.mxu0 0
    %646 = vmatprep.subr.bf16.mxu0 0
    %647 = vmatpush1.bf16.msra.mxu0 0
    %648 = vmatprep.mubr.bf16.mxu0 0
    %649 = vmatmul.mubr.bf16.gmra.mrb[0].mxu0 %v544
    %v650 = vpop.f32.mrb[0].mxu0
    %v651 = vadd.f32 %v566, %v650
    %v652 = vpop.f32.mrb[0].mxu0
    %v653 = vpop.f32.mrb[0].mxu0
    %v654 = vpop.f32.mrb[0].mxu0
    %655 = vdwg.mxu0
    %vm656 = vcmp.gt.f32.partialorder %v651, 0.0
    %v657 = vmul.f32 %v651, 0.2
    %v658 = vsel %vm656, %v651, %v657
    %v659 = vpack.c.bf16 %v658, %v658
    %v660 = vld [vmem:[#allocation13] sm:$0xf]
    %v661 = vld [vmem:[#allocation13 + $0x4] sm:$0xf]
    %v662 = vld [vmem:[#allocation13 + $0x8] sm:$0xf]
    %v663 = vld [vmem:[#allocation13 + $0xc] sm:$0xf]
    %v664 = vld [vmem:[#allocation13 + $0x10] sm:$0xf]
    %v665 = vld [vmem:[#allocation13 + $0x14] sm:$0xf]
    %v666 = vld [vmem:[#allocation13 + $0x18] sm:$0xf]
    %v667 = vld [vmem:[#allocation13 + $0x1c] sm:$0xf]
    %v668 = vld [vmem:[#allocation13 + $0x20] sm:$0xf]
    %v669 = vld [vmem:[#allocation13 + $0x24] sm:$0xf]
    %v670 = vld [vmem:[#allocation13 + $0x28] sm:$0xf]
    %v671 = vld [vmem:[#allocation13 + $0x2c] sm:$0xf]
    %v672 = vld [vmem:[#allocation13 + $0x30] sm:$0xf]
    %v673 = vld [vmem:[#allocation13 + $0x34] sm:$0xf]
    %v674 = vld [vmem:[#allocation13 + $0x38] sm:$0xf]
    %v675 = vld [vmem:[#allocation13 + $0x3c] sm:$0xf]
    %v676 = vld [vmem:[%s11] sm:$0x1]
    %v678 = vlaneseq
    %v679 = vshrl.u32 %v678, 7
    %v680 = vsub.s32 0, %v679
    %v681 = vrot.slane %v676, %v680
    %v699 = vunpack.c.l.b16 %v660
    %v700 = vunpack.c.l.b16 %v661
    %v701 = vunpack.c.l.b16 %v662
    %v702 = vunpack.c.l.b16 %v663
    %v703 = vunpack.c.l.b16 %v664
    %v704 = vunpack.c.l.b16 %v665
    %v705 = vunpack.c.l.b16 %v666
    %v706 = vunpack.c.l.b16 %v667
    %v707 = vunpack.c.l.b16 %v668
    %v708 = vunpack.c.l.b16 %v669
    %v709 = vunpack.c.l.b16 %v670
    %v710 = vunpack.c.l.b16 %v671
    %v711 = vunpack.c.l.b16 %v672
    %v712 = vunpack.c.l.b16 %v673
    %v713 = vunpack.c.l.b16 %v674
    %v714 = vunpack.c.l.b16 %v675
    %v715 = vpack.c.b16 %v700, %v699
    %v716 = vpack.c.b16 %v702, %v701
    %v717 = vpack.c.b16 %v704, %v703
    %v718 = vpack.c.b16 %v706, %v705
    %v719 = vpack.c.b16 %v708, %v707
    %v720 = vpack.c.b16 %v710, %v709
    %v721 = vpack.c.b16 %v712, %v711
    %v722 = vpack.c.b16 %v714, %v713
    %731 = vmatprep.subr.bf16.mxu0 0
    %732 = vmatpush1.bf16.msra.mxu0 %v715
    %733 = vmatprep.subr.bf16.mxu0 0
    %734 = vmatpush1.bf16.msra.mxu0 %v716
    %735 = vmatprep.subr.bf16.mxu0 0
    %736 = vmatpush1.bf16.msra.mxu0 %v717
    %737 = vmatprep.subr.bf16.mxu0 0
    %738 = vmatpush1.bf16.msra.mxu0 %v718
    %739 = vmatprep.subr.bf16.mxu0 0
    %740 = vmatpush1.bf16.msra.mxu0 %v719
    %741 = vmatprep.subr.bf16.mxu0 0
    %742 = vmatpush1.bf16.msra.mxu0 %v720
    %743 = vmatprep.subr.bf16.mxu0 0
    %744 = vmatpush1.bf16.msra.mxu0 %v721
    %745 = vmatprep.subr.bf16.mxu0 0
    %746 = vmatpush1.bf16.msra.mxu0 %v722
    %747 = vmatprep.subr.bf16.mxu0 0
    %748 = vmatpush1.bf16.msra.mxu0 0
    %749 = vmatprep.subr.bf16.mxu0 0
    %750 = vmatpush1.bf16.msra.mxu0 0
    %751 = vmatprep.subr.bf16.mxu0 0
    %752 = vmatpush1.bf16.msra.mxu0 0
    %753 = vmatprep.subr.bf16.mxu0 0
    %754 = vmatpush1.bf16.msra.mxu0 0
    %755 = vmatprep.subr.bf16.mxu0 0
    %756 = vmatpush1.bf16.msra.mxu0 0
    %757 = vmatprep.subr.bf16.mxu0 0
    %758 = vmatpush1.bf16.msra.mxu0 0
    %759 = vmatprep.subr.bf16.mxu0 0
    %760 = vmatpush1.bf16.msra.mxu0 0
    %761 = vmatprep.subr.bf16.mxu0 0
    %762 = vmatpush1.bf16.msra.mxu0 0
    %763 = vmatprep.mubr.bf16.mxu0 0
    %764 = vmatmul.mubr.bf16.gmra.mrb[0].mxu0 %v659
    %v765 = vpop.f32.mrb[0].mxu0
    %v766 = vadd.f32 %v681, %v765
    %v767 = vpop.f32.mrb[0].mxu0
    %v768 = vpop.f32.mrb[0].mxu0
    %v769 = vpop.f32.mrb[0].mxu0
    %770 = vdwg.mxu0
    %v771 = vmax.f32 %v766, 0.0
    %v772 = vpack.c.bf16 %v771, %v771
    %773 = vst [vmem:[#allocation14] sm:$0xf] %v772
    // Predicated region
    $region78: #{_forward.1} parent=1 // pred_check
      _
    $region79: #{_forward.1} parent=1 // pred_check_branch
      %775 = sbr.rel (0) target = $region81
    $region80: #{_forward.1} parent=1 // pred_region
      %s777 = ssub.s32 64, 64
      %778 = vsyncadd [#allocation4], %s777
      %s780 = sshll.u32 [#allocation14], 4
      %s781 = int_to_ptr.vmem [resolvable:$true] %s780
      %783 = dma.vmem_to_hbm [thread:$0]  %s781, 64, %s12, [#allocation4]
    $region81: #{_forward.1} parent=1 // pred_fallthru
      _
    // Predicated region
    $region82: #{_forward.1} parent=1 // pred_check
      _
    $region83: #{_forward.1} parent=1 // pred_check_branch
      %785 = sbr.rel (0) target = $region85
    $region84: #{_forward.1} parent=1 // pred_region
      %786 = dma.done [#allocation4], 64
    $region85: #{_forward.1} parent=1 // pred_fallthru
      _
    %787 = vsyncpa [#allocation3], 1
    %788 = vsyncpa [#allocation6], 1
    %789 = vsyncpa [#allocation9], 1
    %790 = vsyncpa [#allocation12], 1
    %791 = vsyncpa [#allocation4], 1

</llo_original>
